<compile_context>
chip_gen: v7x
topology: tpu7x:2x2x1
jax: 0.10.0
libtpu: 0.0.40
codegen_flags: <defaults>
</compile_context>

<pallas_src>
import functools

import jax
import jax.numpy as jnp
from jax.experimental import pallas as pl
from jax.experimental.pallas import tpu as pltpu


def _round_up(x, m):
    return ((x + m - 1) // m) * m


def _patch_embed_kernel(x_ref, w_ref, b_ref, o_ref):
    # One (TM, K) x (K, E) MXU matmul per grid step; f32 accumulation,
    # f32 bias add, cast to the requested output dtype on store.
    acc = jnp.dot(x_ref[...], w_ref[...], preferred_element_type=jnp.float32)
    o_ref[...] = (acc + b_ref[...]).astype(o_ref.dtype)


def _pick_tile_m(M, K, E, comp_isize, out_isize, tile_m):
    """Pick the M tile.

    As large as a ~20 MiB double-buffered VMEM budget allows (safe on v7x's
    64 MiB physical / 32 MiB scoped default and, with the explicit
    vmem_limit_bytes set below, on v5e's 16 MiB scoped default), capped so
    v7x's two TensorCores each get >= 2 pipelined grid steps, preferring a
    divisor of M so the final tile is not ragged.
    """
    # Per-row VMEM bytes of the streamed, double-buffered tiles.  The (TM, K)
    # block is lane-padded to a multiple of 128 in VMEM, so budget for that.
    per_row = (2 * _round_up(K, 128) * comp_isize
               + 2 * _round_up(E, 128) * out_isize)
    budget = 20 << 20
    cap = max(8, (budget // per_row) // 8 * 8)
    user_cap = 16384 if tile_m is None else max(8, (tile_m // 8) * 8)
    cap = min(cap, user_cap)
    if M >= 2048:
        # v7x megacore: keep grid_m >= 4 so both TensorCores get >= 2 steps.
        cap = min(cap, max(8, _round_up(pl.cdiv(M, 4), 8)))
    if M <= cap:
        return M
    # Prefer a tile that divides M exactly (no padded loads / masked stores on
    # a ragged final tile), as long as it stays within 2x of the cap.
    lo = max(8, ((cap // 2) // 8) * 8)
    for t in range(cap, lo - 1, -8):
        if M % t == 0:
            return t
    return cap


def patch_embed_forward(x, weight, bias, patch_size, *, tile_m=None,
                        compute_dtype=jnp.bfloat16, out_dtype=None):
    """SwinT PatchEmbed forward.

    x:      [B, C, H, W]   (NCHW, like PyTorch)
    weight: [E, C, P, P]   (PyTorch Conv2d weight, OIHW layout)
    bias:   [E]
    Returns (tokens [B, Np, E], Hp, Wp), matching
    `proj(x).flatten(2).transpose(1, 2)`.

    compute_dtype: dtype of the MXU operands (default bf16: the kernel is
      HBM-bound, so halving streamed reads ~doubles throughput; accumulation
      and the bias add stay f32).
    out_dtype: token dtype (default = compute_dtype; pass jnp.float32 for
      exact PyTorch-style f32 output at the cost of 2x output HBM traffic).
    """
    B, C, H, W = x.shape
    E = weight.shape[0]
    P = patch_size
    assert H % P == 0 and W % P == 0, "img_size must be divisible by patch_size"
    Hp, Wp = H // P, W // P
    Np = Hp * Wp
    K = C * P * P
    M = B * Np

    comp_dt = jnp.dtype(compute_dtype)
    out_dt = comp_dt if out_dtype is None else jnp.dtype(out_dtype)
    comp_isize = comp_dt.itemsize
    out_isize = out_dt.itemsize

    # --- layout glue: non-overlapping patch extraction in (c, ph, pw) order to
    # match the Conv2d weight flattening.  allow_input_fusion (below) asks XLA
    # to fuse this transpose/reshape/cast into the pallas_call operand so the
    # [M, K] patch matrix does not round-trip through HBM when jitted.
    xp = x.reshape(B, C, Hp, P, Wp, P)
    xp = jnp.transpose(xp, (0, 2, 4, 1, 3, 5))          # [B, Hp, Wp, C, P, P]
    x_patches = xp.reshape(M, K).astype(comp_dt)

    # --- weights / bias: tiny, VMEM-resident across all M tiles.  Neither E
    # nor K is padded: a sub-128 E only costs masked stores (far cheaper than
    # the extra full output pass of pad-then-slice), and padding K would
    # inflate the dominant streamed read by ~2.7x for nothing.
    w_mat = weight.reshape(E, K).T.astype(comp_dt)      # [K, E]
    b_mat = bias.reshape(1, E).astype(jnp.float32)      # bias added in f32

    # --- M tiling and VMEM bookkeeping.
    TM = _pick_tile_m(M, K, E, comp_isize, out_isize, tile_m)
    grid_m = pl.cdiv(M, TM)

    per_row = (2 * _round_up(K, 128) * comp_isize
               + 2 * _round_up(E, 128) * out_isize)
    vmem_est = (per_row * TM
                + 2 * _round_up(K, 8) * _round_up(E, 128) * comp_isize
                + 2 * 8 * _round_up(E, 128) * 4)
    vmem_limit = int(min(max(2 * vmem_est, 32 << 20), 48 << 20))

    cost = pl.CostEstimate(
        flops=2 * M * K * E,
        transcendentals=0,
        bytes_accessed=(M * K * comp_isize + K * E * comp_isize + 4 * E
                        + M * E * out_isize))

    out = pl.pallas_call(
        _patch_embed_kernel,
        out_shape=jax.ShapeDtypeStruct((M, E), out_dt),
        grid=(grid_m,),
        in_specs=[
            pl.BlockSpec((TM, K), lambda i: (i, 0)),   # streamed over M tiles
            pl.BlockSpec((K, E), lambda i: (0, 0)),    # weights: VMEM-resident
            pl.BlockSpec((1, E), lambda i: (0, 0)),    # bias:    VMEM-resident
        ],
        out_specs=pl.BlockSpec((TM, E), lambda i: (i, 0)),
        compiler_params=pltpu.CompilerParams(
            dimension_semantics=("parallel",),          # v7x: shard M over TCs
            allow_input_fusion=[True, False, False],    # fuse patch transpose
            vmem_limit_bytes=vmem_limit,
        ),
        cost_estimate=cost,
    )(x_patches, w_mat, b_mat)

    return out.reshape(B, Np, E), Hp, Wp


if __name__ == "__main__":
    # Small shapes consistent with the module: img_size=16, channel=4,
    # patch_size=4, emb_dim=32, batch=2  ->  patch_num = 16.
    B, C, IMG, P, EMB = 2, 4, 16, 4, 32

    key = jax.random.PRNGKey(0)
    kx, kw, kb = jax.random.split(key, 3)

    x = jax.random.normal(kx, (B, C, IMG, IMG), dtype=jnp.float32)
    # Deterministic synthetic parameters (Conv2d weight [E, C, P, P], bias [E]).
    weight = jax.random.normal(kw, (EMB, C, P, P), dtype=jnp.float32) * 0.02
    bias = jax.random.normal(kb, (EMB,), dtype=jnp.float32) * 0.02

    # Pure-JAX reference of the strided conv + flatten + transpose.
    ref = jax.lax.conv_general_dilated(
        x, weight, window_strides=(P, P), padding="VALID",
        dimension_numbers=("NCHW", "OIHW", "NCHW"),
        precision=jax.lax.Precision.HIGHEST)
    ref = ref + bias.reshape(1, EMB, 1, 1)
    ref = ref.reshape(B, EMB, -1).transpose(0, 2, 1)

    # Default path: bf16 operands + bf16 tokens (memory-bound fast path).
    fwd_bf16 = jax.jit(functools.partial(patch_embed_forward, patch_size=P))
    tok_bf16, Hp, Wp = fwd_bf16(x, weight, bias)
    tok_bf16 = jax.block_until_ready(tok_bf16)
    assert tok_bf16.shape == (B, (IMG // P) * (IMG // P), EMB)
    assert (int(Hp), int(Wp)) == (IMG // P, IMG // P)
    assert jnp.allclose(tok_bf16.astype(jnp.float32), ref, atol=2e-2, rtol=2e-2)

    # Full-precision path: exact PyTorch-style f32-in / f32-out semantics.
    fwd_f32 = jax.jit(functools.partial(
        patch_embed_forward, patch_size=P,
        compute_dtype=jnp.float32, out_dtype=jnp.float32))
    tok_f32, _, _ = fwd_f32(x, weight, bias)
    tok_f32 = jax.block_until_ready(tok_f32)
    assert tok_f32.dtype == jnp.float32
    assert jnp.allclose(tok_f32, ref, atol=2e-3, rtol=2e-3)

    print("KERNEL_OK")
</pallas_src>

<mosaic_0001>
module attributes {stable_mosaic.version = 11 : i64} {
  func.func @_patch_embed_kernel(%arg0: i32, %arg1: memref<32x64xbf16, #tpu.memory_space<vmem>>, %arg2: memref<64x32xbf16, #tpu.memory_space<vmem>>, %arg3: memref<1x32xf32, #tpu.memory_space<vmem>>, %arg4: memref<32x32xbf16, #tpu.memory_space<vmem>>) attributes {dimension_semantics = [#tpu.dimension_semantics<parallel>], iteration_bounds = array<i64: 1>, scalar_prefetch = 0 : i64, scratch_operands = 0 : i64, tpu.core_type = #tpu.core_type<tc>, window_params = [{transform_indices = @transform_0, window_bounds = array<i64: 32, 64>}, {pipeline_mode = #tpu.pipeline_mode<synchronous>, transform_indices = @transform_1, window_bounds = array<i64: 64, 32>}, {pipeline_mode = #tpu.pipeline_mode<synchronous>, transform_indices = @transform_2, window_bounds = array<i64: 1, 32>}, {transform_indices = @transform_3, window_bounds = array<i64: 32, 32>}]} {
    %c0 = arith.constant 0 : index
    %c0_0 = arith.constant 0 : index
    %0 = vector.load %arg1[%c0, %c0_0] : memref<32x64xbf16, #tpu.memory_space<vmem>>, vector<32x64xbf16>
    %c0_1 = arith.constant 0 : index
    %c0_2 = arith.constant 0 : index
    %1 = vector.load %arg2[%c0_1, %c0_2] : memref<64x32xbf16, #tpu.memory_space<vmem>>, vector<64x32xbf16>
    %cst = arith.constant dense<0.000000e+00> : vector<32x32xf32>
    %2 = tpu.matmul %0, %1, %cst {dimension_numbers = #tpu.dot_dimension_numbers<[1], [0], [0], [1], [0, 0, 1, 1], [], []>} : vector<32x64xbf16>, vector<64x32xbf16>, vector<32x32xf32> -> vector<32x32xf32>
    %c0_3 = arith.constant 0 : index
    %c0_4 = arith.constant 0 : index
    %3 = vector.load %arg3[%c0_3, %c0_4] : memref<1x32xf32, #tpu.memory_space<vmem>>, vector<1x32xf32>
    %4 = vector.broadcast %3 : vector<1x32xf32> to vector<32x32xf32>
    %5 = arith.addf %2, %4 : vector<32x32xf32>
    %6 = arith.truncf %5 : vector<32x32xf32> to vector<32x32xbf16>
    %c0_5 = arith.constant 0 : index
    %c0_6 = arith.constant 0 : index
    %7 = vector.load %arg4[%c0_5, %c0_6] : memref<32x32xbf16, #tpu.memory_space<vmem>>, vector<32x32xbf16>
    tpu.vector_store %arg4[%c0_5, %c0_6], %6 {strides = array<i32>} : memref<32x32xbf16, #tpu.memory_space<vmem>>, vector<32x32xbf16>,
    return
  }
  func.func @transform_0(%arg0: i32) -> (i32, i32) {
    %c0_i32 = arith.constant 0 : i32
    %c0_i32_0 = arith.constant 0 : i32
    return %arg0, %c0_i32 : i32, i32
  }
  func.func @transform_1(%arg0: i32) -> (i32, i32) {
    %c0_i32 = arith.constant 0 : i32
    %c0_i32_0 = arith.constant 0 : i32
    %c0_i32_1 = arith.constant 0 : i32
    return %c0_i32, %c0_i32_0 : i32, i32
  }
  func.func @transform_2(%arg0: i32) -> (i32, i32) {
    %c0_i32 = arith.constant 0 : i32
    %c0_i32_0 = arith.constant 0 : i32
    %c0_i32_1 = arith.constant 0 : i32
    return %c0_i32, %c0_i32_0 : i32, i32
  }
  func.func @transform_3(%arg0: i32) -> (i32, i32) {
    %c0_i32 = arith.constant 0 : i32
    %c0_i32_0 = arith.constant 0 : i32
    return %arg0, %c0_i32 : i32, i32
  }
}

</mosaic_0001>

<llo_original>
// kernel: patch_embed_forward.1
$region0: #{patch_embed_forward.1}
  #allocation0 [shape = 'u32[]', space=smem, size = 0x4, offset = 0x4, fixed_abs, tag = 'smem constant byte address 0x4 - core index']
  #allocation1 [shape = 'u32[144,128]{1,0:T(1,128)}', space=vmem, size = 0x12000, scoped, tag = 'internal scratch']
  %s0 = inlined_call_operand.vmem [shape: bf16[32,64], index: 0, kind: input, shape index: {}]
  %s1 = inlined_call_operand.vmem [shape: bf16[64,32], index: 1, kind: input, shape index: {}]
  %s2 = inlined_call_operand.vmem [shape: f32[1,32], index: 2, kind: input, shape index: {}]
  %s3 = inlined_call_operand.hbm [shape: bf16[32,32], index: 3, kind: output, shape index: {}]
  %s4 = sld [smem:[#allocation0]]
  $region22: #{patch_embed_forward.1} parent=0
    _
  %s6 = ssub.s32 1, %s4
  %s7 = scalar_select 0, %s6, %s4
  $region1: #{patch_embed_forward.1} parent=0
    #allocation2 [shape = 'u8[8192]{0}', space=vmem, size = 0x2000, scoped, tag = 'output window, operand 0, single buffered']
    #allocation3 [shape = 's32[1]{0}', space=sflag, size = 0x4, scoped, tag = 'scoped memory for patch_embed_forward.1']
    %8 = vsyncpa [#allocation3], 0
    // Predicated region
    $region2: #{patch_embed_forward.1} parent=1 // pred_check
      _
    $region3: #{patch_embed_forward.1} parent=1 // pred_check_branch
      %10 = sbr.rel (0) target = $region5
    $region4: #{patch_embed_forward.1} parent=1 // pred_region
      _
    $region5: #{patch_embed_forward.1} parent=1 // pred_fallthru
      _
    // Predicated region
    $region6: #{patch_embed_forward.1} parent=1 // pred_check
      _
    $region7: #{patch_embed_forward.1} parent=1 // pred_check_branch
      %12 = sbr.rel (0) target = $region9
    $region8: #{patch_embed_forward.1} parent=1 // pred_region
      _
    $region9: #{patch_embed_forward.1} parent=1 // pred_fallthru
      _
    // Predicated region
    $region10: #{patch_embed_forward.1} parent=1 // pred_check
      _
    $region11: #{patch_embed_forward.1} parent=1 // pred_check_branch
      %14 = sbr.rel (0) target = $region13
    $region12: #{patch_embed_forward.1} parent=1 // pred_region
      _
    $region13: #{patch_embed_forward.1} parent=1 // pred_fallthru
      _
    %v16 = vld [vmem:[%s0] sm:$0xf]
    %v17 = vld [vmem:[%s0 + $0x4] sm:$0xf]
    %v18 = vld [vmem:[%s0 + $0x8] sm:$0xf]
    %v19 = vld [vmem:[%s0 + $0xc] sm:$0xf]
    %v20 = vld [vmem:[%s1] sm:$0xf]
    %v21 = vld [vmem:[%s1 + $0x4] sm:$0xf]
    %v22 = vld [vmem:[%s1 + $0x8] sm:$0xf]
    %v23 = vld [vmem:[%s1 + $0xc] sm:$0xf]
    %v24 = vld [vmem:[%s1 + $0x10] sm:$0xf]
    %v25 = vld [vmem:[%s1 + $0x14] sm:$0xf]
    %v26 = vld [vmem:[%s1 + $0x18] sm:$0xf]
    %v27 = vld [vmem:[%s1 + $0x1c] sm:$0xf]
    %v28 = vld [vmem:[%s2] sm:$0x1]
    %v30 = vlaneseq
    %v31 = vshrl.u32 %v30, 7
    %v32 = vsub.s32 0, %v31
    %v33 = vrot.slane %v28, %v32
    %v39 = vunpack.c.l.b16 %v16
    %v40 = vunpack.c.l.b16 %v17
    %v41 = vunpack.c.l.b16 %v18
    %v42 = vunpack.c.l.b16 %v19
    %v43 = vpack.c.b16 %v40, %v39
    %v44 = vpack.c.b16 %v42, %v41
    %v53 = vunpack.c.l.b16 %v20
    %v54 = vunpack.c.l.b16 %v21
    %v55 = vunpack.c.l.b16 %v22
    %v56 = vunpack.c.l.b16 %v23
    %v57 = vunpack.c.l.b16 %v24
    %v58 = vunpack.c.l.b16 %v25
    %v59 = vunpack.c.l.b16 %v26
    %v60 = vunpack.c.l.b16 %v27
    %v61 = vpack.c.b16 %v54, %v53
    %v62 = vpack.c.b16 %v56, %v55
    %v63 = vpack.c.b16 %v58, %v57
    %v64 = vpack.c.b16 %v60, %v59
    %vm69 = vcmask 523264
    %v71 = vsel %vm69, %v43, 0
    %v74 = vsel %vm69, %v44, 0
    %76 = vmatprep.subr.bf16.mxu0 0
    %77 = vmatpush1.bf16.msra.mxu0 %v61
    %78 = vmatprep.subr.bf16.mxu0 0
    %79 = vmatpush1.bf16.msra.mxu0 %v62
    %80 = vmatprep.subr.bf16.mxu0 0
    %81 = vmatpush1.bf16.msra.mxu0 %v63
    %82 = vmatprep.subr.bf16.mxu0 0
    %83 = vmatpush1.bf16.msra.mxu0 %v64
    %84 = vmatprep.subr.bf16.mxu0 0
    %85 = vmatpush1.bf16.msra.mxu0 0
    %86 = vmatprep.subr.bf16.mxu0 0
    %87 = vmatpush1.bf16.msra.mxu0 0
    %88 = vmatprep.subr.bf16.mxu0 0
    %89 = vmatpush1.bf16.msra.mxu0 0
    %90 = vmatprep.subr.bf16.mxu0 0
    %91 = vmatpush1.bf16.msra.mxu0 0
    %92 = vmatprep.subr.bf16.mxu0 0
    %93 = vmatpush1.bf16.msra.mxu0 0
    %94 = vmatprep.subr.bf16.mxu0 0
    %95 = vmatpush1.bf16.msra.mxu0 0
    %96 = vmatprep.subr.bf16.mxu0 0
    %97 = vmatpush1.bf16.msra.mxu0 0
    %98 = vmatprep.subr.bf16.mxu0 0
    %99 = vmatpush1.bf16.msra.mxu0 0
    %100 = vmatprep.subr.bf16.mxu0 0
    %101 = vmatpush1.bf16.msra.mxu0 0
    %102 = vmatprep.subr.bf16.mxu0 0
    %103 = vmatpush1.bf16.msra.mxu0 0
    %104 = vmatprep.subr.bf16.mxu0 0
    %105 = vmatpush1.bf16.msra.mxu0 0
    %106 = vmatprep.subr.bf16.mxu0 0
    %107 = vmatpush1.bf16.msra.mxu0 0
    %108 = vmatprep.mubr.bf16.mxu0 0
    %109 = vmatmul.mubr.bf16.gmra.mrb[0].mxu0 %v71
    %v110 = vpop.f32.mrb[0].mxu0
    %v111 = vadd.f32 %v33, %v110
    %v112 = vpop.f32.mrb[0].mxu0
    %v113 = vpop.f32.mrb[0].mxu0
    %v114 = vadd.f32 %v33, %v113
    %v115 = vpop.f32.mrb[0].mxu0
    %116 = vmatprep.mubr.bf16.mxu0 0
    %117 = vmatmul.mubr.bf16.gmra.mrb[0].mxu0 %v74
    %v118 = vpop.f32.mrb[0].mxu0
    %v119 = vadd.f32 %v33, %v118
    %v120 = vpop.f32.mrb[0].mxu0
    %v121 = vpop.f32.mrb[0].mxu0
    %v122 = vadd.f32 %v33, %v121
    %v123 = vpop.f32.mrb[0].mxu0
    %124 = vdwg.mxu0
    %v125 = vpack.c.bf16 %v114, %v111
    %v126 = vpack.c.bf16 %v122, %v119
    %v129 = vunpack.c.l.b16 %v125
    %v130 = vunpack.c.h.b16 %v125
    %v131 = vunpack.c.l.b16 %v126
    %v132 = vunpack.c.h.b16 %v126
    %v133 = vpack.c.b16 %v129, %v129
    %v134 = vpack.c.b16 %v130, %v130
    %v135 = vpack.c.b16 %v131, %v131
    %v136 = vpack.c.b16 %v132, %v132
    %vm141 = vcmask 257024
    %142 = vst.msk [vmem:[#allocation2] sm:$0xf] %vm141, %v133
    %143 = vst.msk [vmem:[#allocation2 + $0x4] sm:$0xf] %vm141, %v134
    %144 = vst.msk [vmem:[#allocation2 + $0x8] sm:$0xf] %vm141, %v135
    %145 = vst.msk [vmem:[#allocation2 + $0xc] sm:$0xf] %vm141, %v136
    // Predicated region
    $region14: #{patch_embed_forward.1} parent=1 // pred_check
      _
    $region15: #{patch_embed_forward.1} parent=1 // pred_check_branch
      %147 = sbr.rel (0) target = $region17
    $region16: #{patch_embed_forward.1} parent=1 // pred_region
      %s149 = ssub.s32 256, 256
      %150 = vsyncadd [#allocation3], %s149
      %s151 = sshll.u32 [#allocation2], 4
      %s152 = int_to_ptr.vmem [resolvable:$true] %s151
      %157 = dma.vmem_to_hbm [thread:$0]  %s152, 256, %s3, [#allocation3], 64, 64, 4
    $region17: #{patch_embed_forward.1} parent=1 // pred_fallthru
      _
    // Predicated region
    $region18: #{patch_embed_forward.1} parent=1 // pred_check
      _
    $region19: #{patch_embed_forward.1} parent=1 // pred_check_branch
      %159 = sbr.rel (0) target = $region21
    $region20: #{patch_embed_forward.1} parent=1 // pred_region
      %160 = dma.done [#allocation3], 256
    $region21: #{patch_embed_forward.1} parent=1 // pred_fallthru
      _
    %161 = vsyncpa [#allocation3], 1

</llo_original>
